<compile_context>
chip_gen: v7x
topology: tpu7x:2x2x1
jax: 0.10.0
libtpu: 0.0.40
codegen_flags: <defaults>
</compile_context>

<pallas_src>
import jax
import jax.numpy as jnp
from jax import lax
from jax.experimental import pallas as pl
from jax.experimental.pallas import tpu as pltpu


def _as_pair(v):
    if isinstance(v, (tuple, list)):
        assert len(v) == 2, "kernel_size / stride must be int or length-2 tuple"
        return int(v[0]), int(v[1])
    return int(v), int(v)


def _window_matrix(size_in, size_out, k, s):
    """(size_in, size_out) f32 matrix: 1.0 inside each pooling window."""
    i = jnp.arange(size_in)[:, None]      # input index
    o = jnp.arange(size_out)[None, :]     # output (window) index
    return ((i >= o * s) & (i < o * s + k)).astype(jnp.float32)


def _avgpool_kernel(x_ref, p_ref, o_ref):
    # x_ref: (B_TILE, H*W)         slab of flattened images (lane-dense)
    # p_ref: (H*W, H_out*W_out)    fused pooling matrix (resident, fetched once)
    # o_ref: (B_TILE, H_out*W_out) flattened pooled outputs
    x = x_ref[...].astype(jnp.float32)            # f32 compute on every gen
    out = jnp.dot(x, p_ref[...], preferred_element_type=jnp.float32)
    o_ref[...] = out.astype(o_ref.dtype)


def relevance_avg_pool2d_forward(x, kernel_size=2, stride=None, eps=1e-5):
    """Forward of RelevancePropagationAvgPool2d == AvgPool2d(kernel, stride).

    `eps` is unused in the forward pass (it only appears in the LRP backward).
    padding=0 and ceil_mode=False (the nn.AvgPool2d defaults) are assumed.
    """
    del eps  # forward does not use eps

    kh, kw = _as_pair(kernel_size)
    if stride is None:
        stride = (kh, kw)                 # nn.AvgPool2d default: stride = kernel
    sh, sw = _as_pair(stride)

    N, C, H, W = x.shape
    H_out = (H - kh) // sh + 1
    W_out = (W - kw) // sw + 1
    assert H_out >= 1 and W_out >= 1, "pooling window larger than input"

    HW = H * W
    OHW = H_out * W_out

    # Guard: fused pooling matrix must stay small (see TODO above for big maps).
    assert HW * OHW * 4 <= 16 * 1024 * 1024, (
        "feature map too large for the fused-pooling-matrix path; "
        "tile spatially / use the separable path instead")

    NC = N * C
    x2d = x.reshape(NC, HW)               # contiguous, free reshape

    # ---- choose the batch tile (rows of the flattened slab per grid step) ----
    itemsize = jnp.dtype(x.dtype).itemsize
    target_block_bytes = 4 * 1024 * 1024          # ~4 MiB input block:
    b_tile = (target_block_bytes // (HW * itemsize)) // 8 * 8
    b_tile = max(8, b_tile)                       # sublane-aligned
    nc_pad8 = ((NC + 7) // 8) * 8
    b_tile = min(b_tile, nc_pad8)
    num_blocks = pl.cdiv(nc_pad8, b_tile)
    # Prefer >= 2 grid steps when there is enough work (v7x: 2 TensorCores).
    if num_blocks == 1 and nc_pad8 >= 16:
        b_tile = ((nc_pad8 // 2) + 7) // 8 * 8
        num_blocks = pl.cdiv(nc_pad8, b_tile)
    NC_pad = num_blocks * b_tile

    if NC_pad != NC:
        x2d = jnp.pad(x2d, ((0, NC_pad - NC), (0, 0)))

    # Fused pooling matrix, built in f32 (not x.dtype) for correctness.
    p = jnp.kron(_window_matrix(H, H_out, kh, sh),
                 _window_matrix(W, W_out, kw, sw)) / float(kh * kw)   # (HW, OHW)

    out2d = pl.pallas_call(
        _avgpool_kernel,
        out_shape=jax.ShapeDtypeStruct((NC_pad, OHW), x.dtype),
        grid_spec=pltpu.PrefetchScalarGridSpec(
            num_scalar_prefetch=0,
            grid=(num_blocks,),
            in_specs=[
                pl.BlockSpec((b_tile, HW), lambda i: (i, 0)),
                pl.BlockSpec((HW, OHW), lambda i: (0, 0)),   # resident, 1 fetch
            ],
            out_specs=pl.BlockSpec((b_tile, OHW), lambda i: (i, 0)),
        ),
        compiler_params=pltpu.CompilerParams(
            dimension_semantics=("parallel",),
            vmem_limit_bytes=48 * 1024 * 1024,
        ),
    )(x2d, p)

    return out2d[:NC].reshape(N, C, H_out, W_out)


if __name__ == "__main__":
    key = jax.random.PRNGKey(0)
    N, C, H, W = 2, 4, 16, 16
    x = jax.random.normal(key, (N, C, H, W), dtype=jnp.float32)

    # --- case 1: the module's config (kernel=2, stride=2, padding=0) ---------
    out = relevance_avg_pool2d_forward(x, kernel_size=2)
    out = jax.block_until_ready(out)
    ref = x.reshape(N, C, H // 2, 2, W // 2, 2).mean(axis=(3, 5))
    assert out.shape == (N, C, H // 2, W // 2)
    assert out.dtype == x.dtype
    assert jnp.allclose(out, ref, atol=1e-5, rtol=1e-5)

    # --- case 2: overlapping windows (kernel=3, stride=2) --------------------
    out2 = relevance_avg_pool2d_forward(x, kernel_size=3, stride=2)
    out2 = jax.block_until_ready(out2)
    ref2 = lax.reduce_window(x, 0.0, lax.add,
                             window_dimensions=(1, 1, 3, 3),
                             window_strides=(1, 1, 2, 2),
                             padding="VALID") / 9.0
    assert out2.shape == ref2.shape
    assert jnp.allclose(out2, ref2, atol=1e-5, rtol=1e-5)

    print("KERNEL_OK")
</pallas_src>

<mosaic_0001>
module attributes {stable_mosaic.version = 11 : i64} {
  func.func @_avgpool_kernel(%arg0: i32, %arg1: memref<8x256xf32, #tpu.memory_space<vmem>>, %arg2: memref<256x64xf32, #tpu.memory_space<vmem>>, %arg3: memref<8x64xf32, #tpu.memory_space<vmem>>) attributes {dimension_semantics = [#tpu.dimension_semantics<parallel>], iteration_bounds = array<i64: 1>, scalar_prefetch = 0 : i64, scratch_operands = 0 : i64, tpu.core_type = #tpu.core_type<tc>, window_params = [{transform_indices = @transform_0, window_bounds = array<i64: 8, 256>}, {pipeline_mode = #tpu.pipeline_mode<synchronous>, transform_indices = @transform_1, window_bounds = array<i64: 256, 64>}, {transform_indices = @transform_2, window_bounds = array<i64: 8, 64>}]} {
    %c0 = arith.constant 0 : index
    %c0_0 = arith.constant 0 : index
    %0 = vector.load %arg1[%c0, %c0_0] : memref<8x256xf32, #tpu.memory_space<vmem>>, vector<8x256xf32>
    %c0_1 = arith.constant 0 : index
    %c0_2 = arith.constant 0 : index
    %1 = vector.load %arg2[%c0_1, %c0_2] : memref<256x64xf32, #tpu.memory_space<vmem>>, vector<256x64xf32>
    %cst = arith.constant dense<0.000000e+00> : vector<8x64xf32>
    %2 = tpu.matmul %0, %1, %cst {dimension_numbers = #tpu.dot_dimension_numbers<[1], [0], [0], [1], [0, 0, 1, 1], [], []>} : vector<8x256xf32>, vector<256x64xf32>, vector<8x64xf32> -> vector<8x64xf32>
    %c0_3 = arith.constant 0 : index
    %c0_4 = arith.constant 0 : index
    %3 = vector.load %arg3[%c0_3, %c0_4] : memref<8x64xf32, #tpu.memory_space<vmem>>, vector<8x64xf32>
    tpu.vector_store %arg3[%c0_3, %c0_4], %2 {strides = array<i32>} : memref<8x64xf32, #tpu.memory_space<vmem>>, vector<8x64xf32>,
    return
  }
  func.func @transform_0(%arg0: i32) -> (i32, i32) {
    %c0_i32 = arith.constant 0 : i32
    %c0_i32_0 = arith.constant 0 : i32
    return %arg0, %c0_i32 : i32, i32
  }
  func.func @transform_1(%arg0: i32) -> (i32, i32) {
    %c0_i32 = arith.constant 0 : i32
    %c0_i32_0 = arith.constant 0 : i32
    %c0_i32_1 = arith.constant 0 : i32
    return %c0_i32, %c0_i32_0 : i32, i32
  }
  func.func @transform_2(%arg0: i32) -> (i32, i32) {
    %c0_i32 = arith.constant 0 : i32
    %c0_i32_0 = arith.constant 0 : i32
    return %arg0, %c0_i32 : i32, i32
  }
}

</mosaic_0001>

<llo_original>
// kernel: tpu_custom_call.1
$region0: #{tpu_custom_call.1}
  #allocation0 [shape = 'u32[]', space=smem, size = 0x4, offset = 0x4, fixed_abs, tag = 'smem constant byte address 0x4 - core index']
  #allocation1 [shape = 'u32[144,128]{1,0:T(1,128)}', space=vmem, size = 0x12000, scoped, tag = 'internal scratch']
  %s0 = inlined_call_operand.vmem [shape: f32[8,256], index: 0, kind: input, shape index: {}]
  %s1 = inlined_call_operand.vmem [shape: f32[256,64], index: 1, kind: input, shape index: {}]
  %s2 = inlined_call_operand.hbm [shape: f32[8,64], index: 2, kind: output, shape index: {}]
  %s3 = sld [smem:[#allocation0]]
  $region18: #{tpu_custom_call.1} parent=0
    _
  %s5 = ssub.s32 1, %s3
  %s6 = scalar_select 0, %s5, %s3
  $region1: #{tpu_custom_call.1} parent=0
    #allocation2 [shape = 'u8[4096]{0}', space=vmem, size = 0x1000, scoped, tag = 'output window, operand 0, single buffered']
    #allocation3 [shape = 's32[1]{0}', space=sflag, size = 0x4, scoped, tag = 'scoped memory for tpu_custom_call.1']
    %7 = vsyncpa [#allocation3], 0
    // Predicated region
    $region2: #{tpu_custom_call.1} parent=1 // pred_check
      _
    $region3: #{tpu_custom_call.1} parent=1 // pred_check_branch
      %9 = sbr.rel (0) target = $region5
    $region4: #{tpu_custom_call.1} parent=1 // pred_region
      _
    $region5: #{tpu_custom_call.1} parent=1 // pred_fallthru
      _
    // Predicated region
    $region6: #{tpu_custom_call.1} parent=1 // pred_check
      _
    $region7: #{tpu_custom_call.1} parent=1 // pred_check_branch
      %11 = sbr.rel (0) target = $region9
    $region8: #{tpu_custom_call.1} parent=1 // pred_region
      _
    $region9: #{tpu_custom_call.1} parent=1 // pred_fallthru
      _
    %v12 = vld [vmem:[%s0] sm:$0xff]
    %v13 = vld [vmem:[%s0 + $0x8] sm:$0xff]
    %v14 = vld [vmem:[%s1] sm:$0xff]
    %v15 = vld [vmem:[%s1 + $0x8] sm:$0xff]
    %v16 = vld [vmem:[%s1 + $0x10] sm:$0xff]
    %v17 = vld [vmem:[%s1 + $0x18] sm:$0xff]
    %v18 = vld [vmem:[%s1 + $0x20] sm:$0xff]
    %v19 = vld [vmem:[%s1 + $0x28] sm:$0xff]
    %v20 = vld [vmem:[%s1 + $0x30] sm:$0xff]
    %v21 = vld [vmem:[%s1 + $0x38] sm:$0xff]
    %v22 = vld [vmem:[%s1 + $0x40] sm:$0xff]
    %v23 = vld [vmem:[%s1 + $0x48] sm:$0xff]
    %v24 = vld [vmem:[%s1 + $0x50] sm:$0xff]
    %v25 = vld [vmem:[%s1 + $0x58] sm:$0xff]
    %v26 = vld [vmem:[%s1 + $0x60] sm:$0xff]
    %v27 = vld [vmem:[%s1 + $0x68] sm:$0xff]
    %v28 = vld [vmem:[%s1 + $0x70] sm:$0xff]
    %v29 = vld [vmem:[%s1 + $0x78] sm:$0xff]
    %v30 = vld [vmem:[%s1 + $0x80] sm:$0xff]
    %v31 = vld [vmem:[%s1 + $0x88] sm:$0xff]
    %v32 = vld [vmem:[%s1 + $0x90] sm:$0xff]
    %v33 = vld [vmem:[%s1 + $0x98] sm:$0xff]
    %v34 = vld [vmem:[%s1 + $0xa0] sm:$0xff]
    %v35 = vld [vmem:[%s1 + $0xa8] sm:$0xff]
    %v36 = vld [vmem:[%s1 + $0xb0] sm:$0xff]
    %v37 = vld [vmem:[%s1 + $0xb8] sm:$0xff]
    %v38 = vld [vmem:[%s1 + $0xc0] sm:$0xff]
    %v39 = vld [vmem:[%s1 + $0xc8] sm:$0xff]
    %v40 = vld [vmem:[%s1 + $0xd0] sm:$0xff]
    %v41 = vld [vmem:[%s1 + $0xd8] sm:$0xff]
    %v42 = vld [vmem:[%s1 + $0xe0] sm:$0xff]
    %v43 = vld [vmem:[%s1 + $0xe8] sm:$0xff]
    %v44 = vld [vmem:[%s1 + $0xf0] sm:$0xff]
    %v45 = vld [vmem:[%s1 + $0xf8] sm:$0xff]
    %46 = vmatprep.subr.mxu0 0.0
    %47 = vmatpush1.msra.mxu0 %v14
    %48 = vmatprep.subr.mxu0 0.0
    %49 = vmatpush1.msra.mxu0 %v15
    %50 = vmatprep.subr.mxu0 0.0
    %51 = vmatpush1.msra.mxu0 %v16
    %52 = vmatprep.subr.mxu0 0.0
    %53 = vmatpush1.msra.mxu0 %v17
    %54 = vmatprep.subr.mxu0 0.0
    %55 = vmatpush1.msra.mxu0 %v18
    %56 = vmatprep.subr.mxu0 0.0
    %57 = vmatpush1.msra.mxu0 %v19
    %58 = vmatprep.subr.mxu0 0.0
    %59 = vmatpush1.msra.mxu0 %v20
    %60 = vmatprep.subr.mxu0 0.0
    %61 = vmatpush1.msra.mxu0 %v21
    %62 = vmatprep.subr.mxu0 0.0
    %63 = vmatpush1.msra.mxu0 %v22
    %64 = vmatprep.subr.mxu0 0.0
    %65 = vmatpush1.msra.mxu0 %v23
    %66 = vmatprep.subr.mxu0 0.0
    %67 = vmatpush1.msra.mxu0 %v24
    %68 = vmatprep.subr.mxu0 0.0
    %69 = vmatpush1.msra.mxu0 %v25
    %70 = vmatprep.subr.mxu0 0.0
    %71 = vmatpush1.msra.mxu0 %v26
    %72 = vmatprep.subr.mxu0 0.0
    %73 = vmatpush1.msra.mxu0 %v27
    %74 = vmatprep.subr.mxu0 0.0
    %75 = vmatpush1.msra.mxu0 %v28
    %76 = vmatprep.subr.mxu0 0.0
    %77 = vmatpush1.msra.mxu0 %v29
    %78 = vmatprep.subr.mxu0 0.0
    %79 = vmatpush1.msra.mxu0 %v30
    %80 = vmatprep.subr.mxu0 0.0
    %81 = vmatpush1.msra.mxu0 %v31
    %82 = vmatprep.subr.mxu0 0.0
    %83 = vmatpush1.msra.mxu0 %v32
    %84 = vmatprep.subr.mxu0 0.0
    %85 = vmatpush1.msra.mxu0 %v33
    %86 = vmatprep.subr.mxu0 0.0
    %87 = vmatpush1.msra.mxu0 %v34
    %88 = vmatprep.subr.mxu0 0.0
    %89 = vmatpush1.msra.mxu0 %v35
    %90 = vmatprep.subr.mxu0 0.0
    %91 = vmatpush1.msra.mxu0 %v36
    %92 = vmatprep.subr.mxu0 0.0
    %93 = vmatpush1.msra.mxu0 %v37
    %94 = vmatprep.subr.mxu0 0.0
    %95 = vmatpush1.msra.mxu0 %v38
    %96 = vmatprep.subr.mxu0 0.0
    %97 = vmatpush1.msra.mxu0 %v39
    %98 = vmatprep.subr.mxu0 0.0
    %99 = vmatpush1.msra.mxu0 %v40
    %100 = vmatprep.subr.mxu0 0.0
    %101 = vmatpush1.msra.mxu0 %v41
    %102 = vmatprep.subr.mxu0 0.0
    %103 = vmatpush1.msra.mxu0 %v42
    %104 = vmatprep.subr.mxu0 0.0
    %105 = vmatpush1.msra.mxu0 %v43
    %106 = vmatprep.subr.mxu0 0.0
    %107 = vmatpush1.msra.mxu0 %v44
    %108 = vmatprep.subr.mxu0 0.0
    %109 = vmatpush1.msra.mxu0 %v45
    %110 = vmatprep.mubr.f32.mxu0 %v13
    %111 = vmatmul.mubr.f32.gmra.mrb[0].mxu0 %v12
    %v112 = vpop.f32.mrb[0].mxu0
    %v113 = vadd.f32 0.0, %v112
    %v114 = vpop.f32.mrb[0].mxu0
    %115 = vdwg.mxu0
    %vm116 = vcmask 523264
    %117 = vst.msk [vmem:[#allocation2] sm:$0xff] %vm116, %v113
    // Predicated region
    $region10: #{tpu_custom_call.1} parent=1 // pred_check
      _
    $region11: #{tpu_custom_call.1} parent=1 // pred_check_branch
      %119 = sbr.rel (0) target = $region13
    $region12: #{tpu_custom_call.1} parent=1 // pred_region
      %s121 = ssub.s32 128, 128
      %122 = vsyncadd [#allocation3], %s121
      %s124 = sshll.u32 [#allocation2], 4
      %s125 = int_to_ptr.vmem [resolvable:$true] %s124
      %127 = dma.vmem_to_hbm [thread:$0]  %s125, 128, %s2, [#allocation3]
    $region13: #{tpu_custom_call.1} parent=1 // pred_fallthru
      _
    // Predicated region
    $region14: #{tpu_custom_call.1} parent=1 // pred_check
      _
    $region15: #{tpu_custom_call.1} parent=1 // pred_check_branch
      %129 = sbr.rel (0) target = $region17
    $region16: #{tpu_custom_call.1} parent=1 // pred_region
      %130 = dma.done [#allocation3], 128
    $region17: #{tpu_custom_call.1} parent=1 // pred_fallthru
      _
    %131 = vsyncpa [#allocation3], 1

</llo_original>
